<compile_context>
chip_gen: v7x
topology: tpu7x:2x2x1
jax: 0.10.0
libtpu: 0.0.40
codegen_flags: <defaults>
</compile_context>

<pallas_src>
import functools

import numpy as np
import jax
import jax.numpy as jnp
from jax.experimental import pallas as pl
from jax.experimental.pallas import tpu as pltpu


def _round_up(x, m):
    return (x + m - 1) // m * m


@functools.lru_cache(maxsize=1)
def _tpu_config():
    """Generation-dependent knobs: per-input tile bytes, VMEM limit, TC split."""
    kind = ""
    try:
        kind = jax.devices()[0].device_kind.lower()
    except Exception:
        pass
    if "7" in kind:        # v7x: 2 TCs/chip, 64 MiB VMEM/TC, ~3.2 TB/s HBM
        return {"num_splits": 2, "tile_bytes": 8 << 20, "vmem_limit": 48 << 20}
    if "v6" in kind:       # v6e: 1 TC, 128 MiB VMEM, ~1.4 TB/s HBM
        return {"num_splits": 1, "tile_bytes": 8 << 20, "vmem_limit": 64 << 20}
    # v5e and anything else: conservative tiles, default-ish scoped VMEM.
    return {"num_splits": 1, "tile_bytes": 4 << 20, "vmem_limit": 32 << 20}


# ----------------------------------------------------------------------------
# Kernel 1: sum((a - b)^2) over one layer.
#   grid = (num_splits, blocks_per_split); axis 1 is the reduction axis.
#   A scalar SMEM accumulator holds the running sum; the (1, 8, 128) output
#   block is written once per split at the last reduction step.
# ----------------------------------------------------------------------------
def _sq_diff_sum_kernel(a_ref, b_ref, out_ref, acc_ref, *,
                        rows_total, has_tail, all_full):
    i = pl.program_id(1)

    @pl.when(i == 0)
    def _init():
        acc_ref[0] = jnp.float32(0.0)

    d = a_ref[...].astype(jnp.float32) - b_ref[...].astype(jnp.float32)
    dd = d * d

    if all_full:
        # Every grid step maps to a distinct, fully-valid block.
        acc_ref[0] += jnp.sum(dd)
    else:
        tm = a_ref.shape[0]
        blk = pl.program_id(0) * pl.num_programs(1) + i
        valid_rows = rows_total - blk * tm          # <=0 for clamped pad blocks

        @pl.when(valid_rows >= tm)
        def _full():
            acc_ref[0] += jnp.sum(dd)

        if has_tail:
            @pl.when(jnp.logical_and(valid_rows > 0, valid_rows < tm))
            def _tail():
                r = jax.lax.broadcasted_iota(jnp.int32, dd.shape, 0)
                acc_ref[0] += jnp.sum(jnp.where(r < valid_rows, dd, 0.0))

    @pl.when(i == pl.num_programs(1) - 1)
    def _write():
        out_ref[...] = jnp.full(out_ref.shape, acc_ref[0], dtype=jnp.float32)


def _sq_diff_sum_impl(a, b):
    """sum((a - b)**2) over all elements — one Pallas reduction, no HBM copies."""
    assert a.size == b.size, "act/sig element counts must match"
    cfg = _tpu_config()
    num_splits = cfg["num_splits"]
    n = int(a.size)

    # Lane-dense 2D view via a pure (metadata-only) reshape — no HBM copy.
    C = next((c for c in (512, 256, 128) if n % c == 0), None)
    if C is None:
        # Fall back to the operand's own trailing dim (still a free reshape);
        # lanes may be under-utilized but no padding copy is materialized.
        C = int(a.shape[-1]) if a.ndim >= 1 else 1
    R = n // C
    a2d = a.reshape(R, C)
    b2d = b.reshape(R, C)

    itemsize = max(jnp.dtype(a.dtype).itemsize, jnp.dtype(b.dtype).itemsize)
    row_bytes = _round_up(C, 128) * itemsize        # VMEM bytes/row (lane-padded)
    tm = max(8, (cfg["tile_bytes"] // row_bytes) // 8 * 8)
    if tm >= R:
        tm = R                                      # single block == full array dims
    nb = pl.cdiv(R, tm)                             # real reduction blocks
    bps = pl.cdiv(nb, num_splits)                   # blocks per core (grid axis 1)
    has_tail = (R % tm) != 0
    all_full = (not has_tail) and (nb % num_splits == 0)

    kernel = functools.partial(_sq_diff_sum_kernel, rows_total=R,
                               has_tail=has_tail, all_full=all_full)
    in_map = lambda c, i: (jnp.minimum(c * bps + i, nb - 1), 0)

    out = pl.pallas_call(
        kernel,
        out_shape=jax.ShapeDtypeStruct((num_splits, 8, 128), jnp.float32),
        grid_spec=pltpu.PrefetchScalarGridSpec(
            num_scalar_prefetch=0,
            grid=(num_splits, bps),
            in_specs=[pl.BlockSpec((tm, C), in_map),
                      pl.BlockSpec((tm, C), in_map)],
            out_specs=pl.BlockSpec((1, 8, 128), lambda c, i: (c, 0, 0)),
            scratch_shapes=[pltpu.SMEM((1,), jnp.float32)],
        ),
        compiler_params=pltpu.CompilerParams(
            dimension_semantics=("parallel", "arbitrary"),
            vmem_limit_bytes=cfg["vmem_limit"],
        ),
    )(a2d, b2d)
    return out[:, 0, 0].sum()


_sq_diff_sum = jax.jit(_sq_diff_sum_impl)


# ----------------------------------------------------------------------------
# Kernel 2: mean cross-entropy over (B, K) logits.
#   No logits padding: the class axis is one full-width block; partial batch
#   blocks are masked with a row-validity check against the static true B.
# ----------------------------------------------------------------------------
def _ce_sum_kernel(logits_ref, labels_ref, out_ref, acc_ref, *, batch):
    i = pl.program_id(1)

    @pl.when(i == 0)
    def _init():
        acc_ref[0] = jnp.float32(0.0)

    tb = logits_ref.shape[0]
    blk = pl.program_id(0) * pl.num_programs(1) + i
    valid_rows = batch - blk * tb                   # <=0 for clamped pad blocks

    x = logits_ref[...].astype(jnp.float32)                          # (tb, K)
    m = jnp.max(x, axis=-1, keepdims=True)
    lse = jnp.log(jnp.sum(jnp.exp(x - m), axis=-1, keepdims=True)) + m
    k_ids = jax.lax.broadcasted_iota(jnp.int32, x.shape, 1)
    tgt = jnp.sum(jnp.where(k_ids == labels_ref[...], x, 0.0),
                  axis=-1, keepdims=True)                            # (tb, 1)
    r = jax.lax.broadcasted_iota(jnp.int32, (tb, 1), 0)
    acc_ref[0] += jnp.sum(jnp.where(r < valid_rows, lse - tgt, 0.0))

    @pl.when(i == pl.num_programs(1) - 1)
    def _write():
        out_ref[...] = jnp.full(out_ref.shape, acc_ref[0], dtype=jnp.float32)


def _cross_entropy_mean_impl(logits, labels):
    B, K = logits.shape
    cfg = _tpu_config()
    num_splits = cfg["num_splits"]

    itemsize = jnp.dtype(logits.dtype).itemsize
    row_bytes = _round_up(K, 128) * itemsize
    tb = max(8, (cfg["tile_bytes"] // row_bytes) // 8 * 8)
    if tb >= B:
        tb = B                                      # single block == full batch
    nb = pl.cdiv(B, tb)
    bps = pl.cdiv(nb, num_splits)
    labels2d = labels.reshape(B, 1).astype(jnp.int32)

    kernel = functools.partial(_ce_sum_kernel, batch=B)
    in_map = lambda c, i: (jnp.minimum(c * bps + i, nb - 1), 0)

    out = pl.pallas_call(
        kernel,
        out_shape=jax.ShapeDtypeStruct((num_splits, 8, 128), jnp.float32),
        grid_spec=pltpu.PrefetchScalarGridSpec(
            num_scalar_prefetch=0,
            grid=(num_splits, bps),
            in_specs=[pl.BlockSpec((tb, K), in_map),
                      pl.BlockSpec((tb, 1), in_map)],
            out_specs=pl.BlockSpec((1, 8, 128), lambda c, i: (c, 0, 0)),
            scratch_shapes=[pltpu.SMEM((1,), jnp.float32)],
        ),
        compiler_params=pltpu.CompilerParams(
            dimension_semantics=("parallel", "arbitrary"),
            vmem_limit_bytes=cfg["vmem_limit"],
        ),
    )(logits, labels2d)
    return out[:, 0, 0].sum() / jnp.float32(B)


_cross_entropy_mean = jax.jit(_cross_entropy_mean_impl)


# ----------------------------------------------------------------------------
# Module-level glue (mirrors the PyTorch code)
# ----------------------------------------------------------------------------
def compute_scl_loss(args, A, B):
    # F.mse_loss(A, B) * A.shape[2] * args.loss_scale_C
    s = _sq_diff_sum(A, B)
    return s * (float(A.shape[2]) * float(args.loss_scale_C) / float(A.size))


class C2Loss_AE:
    def __init__(self, args):
        self.args = args
        self.method = args.method

    def forward(self, activations, signals, target, method='final'):
        if method == 'local':
            losses = []
            for act, sig in zip(activations, signals):
                # The PyTorch .view() adjustments are row-major views: they do
                # not change the flattened order, hence not the squared-error
                # sum.  Only the effective shape[2] used for the weight changes,
                # so no reshape is materialized here at all.
                if act.ndim == 4 and sig.ndim == 2:
                    eff_dim2 = act.shape[2]
                elif act.ndim == 2 and sig.ndim == 4:
                    eff_dim2 = sig.shape[2]
                else:
                    eff_dim2 = act.shape[2]
                weight = (float(eff_dim2) * float(self.args.loss_scale_C)
                          / float(act.size))
                losses.append(_sq_diff_sum(act, sig) * jnp.float32(weight))
            total = losses[0]
            for l in losses[1:]:
                total = total + l
            # NOTE: device scalars are returned (no .item()/float() host sync);
            # callers may convert lazily with float(...).
            return total, losses[-1]
        elif method == 'final':
            loss = _cross_entropy_mean(activations[-1], target)
            return loss, loss

    __call__ = forward


class Args:
    loss_scale_C = 0.5
    method = 'final'


if __name__ == "__main__":
    key = jax.random.PRNGKey(0)
    k1, k2, k3, k4, k5, k6 = jax.random.split(key, 6)

    # local-branch inputs: two (act, sig) 4D pairs, NCHW
    act1 = jax.random.normal(k1, (2, 4, 16, 16), dtype=jnp.float32)
    sig1 = jax.random.normal(k2, (2, 4, 16, 16), dtype=jnp.float32)
    act2 = jax.random.normal(k3, (2, 8, 8, 8), dtype=jnp.float32)
    sig2 = jax.random.normal(k4, (2, 8, 8, 8), dtype=jnp.float32)

    # final-branch inputs: logits (B, num_classes) and int targets
    logits = jax.random.normal(k5, (2, 8), dtype=jnp.float32)
    target = jax.random.randint(k6, (2,), 0, 8, dtype=jnp.int32)

    args = Args()
    loss_mod = C2Loss_AE(args)

    # --- local branch ---
    local_total, local_last = loss_mod.forward(
        [act1, act2], [sig1, sig2], None, method='local')
    local_total, local_last = jax.block_until_ready((local_total, local_last))

    def ref_scl(A, B):
        return jnp.mean((A - B) ** 2) * A.shape[2] * args.loss_scale_C

    ref_l1 = ref_scl(act1, sig1)
    ref_l2 = ref_scl(act2, sig2)
    np.testing.assert_allclose(np.asarray(local_total),
                               np.asarray(ref_l1 + ref_l2),
                               rtol=1e-5, atol=1e-5)
    np.testing.assert_allclose(np.asarray(local_last), np.asarray(ref_l2),
                               rtol=1e-5, atol=1e-5)

    # --- standalone compute_scl_loss ---
    scl = jax.block_until_ready(compute_scl_loss(args, act1, sig1))
    np.testing.assert_allclose(np.asarray(scl), np.asarray(ref_l1),
                               rtol=1e-5, atol=1e-5)

    # --- final branch ---
    final_loss, final_item = loss_mod.forward(
        [act1, act2, logits], [], target, method='final')
    final_loss = jax.block_until_ready(final_loss)

    logp = jax.nn.log_softmax(logits, axis=-1)
    ref_final = -jnp.mean(logp[jnp.arange(logits.shape[0]), target])
    np.testing.assert_allclose(np.asarray(final_loss), np.asarray(ref_final),
                               rtol=1e-5, atol=1e-5)

    print("KERNEL_OK")
</pallas_src>

<mosaic_0001>
module attributes {stable_mosaic.version = 11 : i64} {
  func.func @_sq_diff_sum_kernel(%arg0: i32, %arg1: i32, %arg2: memref<4x512xf32, #tpu.memory_space<vmem>>, %arg3: memref<4x512xf32, #tpu.memory_space<vmem>>, %arg4: memref<1x8x128xf32, #tpu.memory_space<vmem>>, %arg5: memref<1xf32, #tpu.memory_space<smem>>) attributes {dimension_semantics = [#tpu.dimension_semantics<parallel>, #tpu.dimension_semantics<arbitrary>], iteration_bounds = array<i64: 1, 1>, scalar_prefetch = 0 : i64, scratch_operands = 1 : i64, tpu.core_type = #tpu.core_type<tc>, window_params = [{transform_indices = @transform_0, window_bounds = array<i64: 4, 512>}, {transform_indices = @transform_1, window_bounds = array<i64: 4, 512>}, {transform_indices = @transform_2, window_bounds = array<i64: 1, 8, 128>}]} {
    %c0_i32 = arith.constant 0 : i32
    %0 = arith.cmpi eq, %arg1, %c0_i32 : i32
    %1 = arith.extui %0 : i1 to i32
    %c0_i32_0 = arith.constant 0 : i32
    %2 = arith.cmpi ne, %1, %c0_i32_0 : i32
    scf.if %2 {
      %cst_8 = arith.constant 0.000000e+00 : f32
      %c0_9 = arith.constant 0 : index
      %17 = memref.load %arg5[%c0_9] : memref<1xf32, #tpu.memory_space<smem>>
      memref.store %cst_8, %arg5[%c0_9] : memref<1xf32, #tpu.memory_space<smem>>
    } else {
    }
    %c0 = arith.constant 0 : index
    %c0_1 = arith.constant 0 : index
    %3 = vector.load %arg2[%c0, %c0_1] : memref<4x512xf32, #tpu.memory_space<vmem>>, vector<4x512xf32>
    %c0_2 = arith.constant 0 : index
    %c0_3 = arith.constant 0 : index
    %4 = vector.load %arg3[%c0_2, %c0_3] : memref<4x512xf32, #tpu.memory_space<vmem>>, vector<4x512xf32>
    %5 = arith.subf %3, %4 : vector<4x512xf32>
    %6 = arith.mulf %5, %5 : vector<4x512xf32>
    %c0_4 = arith.constant 0 : index
    %7 = memref.load %arg5[%c0_4] : memref<1xf32, #tpu.memory_space<smem>>
    %8 = vector.shape_cast %6 : vector<4x512xf32> to vector<1x4x512xf32>
    %cst = arith.constant dense<0.000000e+00> : vector<1xf32>
    %9 = vector.multi_reduction <add>, %8, %cst [1, 2] : vector<1x4x512xf32> to vector<1xf32>
    %10 = vector.shape_cast %9 : vector<1xf32> to vector<1x1x1xf32>
    %11 = vector.extract %10[0, 0, 0] : f32 from vector<1x1x1xf32>
    %12 = arith.addf %7, %11 : f32
    %c0_5 = arith.constant 0 : index
    %13 = memref.load %arg5[%c0_5] : memref<1xf32, #tpu.memory_space<smem>>
    memref.store %12, %arg5[%c0_5] : memref<1xf32, #tpu.memory_space<smem>>
    %c0_i32_6 = arith.constant 0 : i32
    %14 = arith.cmpi eq, %arg1, %c0_i32_6 : i32
    %15 = arith.extui %14 : i1 to i32
    %c0_i32_7 = arith.constant 0 : i32
    %16 = arith.cmpi ne, %15, %c0_i32_7 : i32
    scf.if %16 {
      %c0_8 = arith.constant 0 : index
      %17 = memref.load %arg5[%c0_8] : memref<1xf32, #tpu.memory_space<smem>>
      %18 = vector.broadcast %17 : f32 to vector<1x8x128xf32>
      %c0_9 = arith.constant 0 : index
      %c0_10 = arith.constant 0 : index
      %c0_11 = arith.constant 0 : index
      %19 = vector.load %arg4[%c0_9, %c0_10, %c0_11] : memref<1x8x128xf32, #tpu.memory_space<vmem>>, vector<1x8x128xf32>
      tpu.vector_store %arg4[%c0_9, %c0_10, %c0_11], %18 {strides = array<i32>} : memref<1x8x128xf32, #tpu.memory_space<vmem>>, vector<1x8x128xf32>,
    } else {
    }
    return
  }
  func.func @transform_0(%arg0: i32, %arg1: i32) -> (i32, i32) {
    %c1_i32 = arith.constant 1 : i32
    %0 = arith.muli %arg0, %c1_i32 : i32
    %1 = arith.addi %0, %arg1 : i32
    %c0_i32 = arith.constant 0 : i32
    %2 = arith.minsi %1, %c0_i32 : i32
    %c0_i32_0 = arith.constant 0 : i32
    %c0_i32_1 = arith.constant 0 : i32
    return %2, %c0_i32_0 : i32, i32
  }
  func.func @transform_1(%arg0: i32, %arg1: i32) -> (i32, i32) {
    %c1_i32 = arith.constant 1 : i32
    %0 = arith.muli %arg0, %c1_i32 : i32
    %1 = arith.addi %0, %arg1 : i32
    %c0_i32 = arith.constant 0 : i32
    %2 = arith.minsi %1, %c0_i32 : i32
    %c0_i32_0 = arith.constant 0 : i32
    %c0_i32_1 = arith.constant 0 : i32
    return %2, %c0_i32_0 : i32, i32
  }
  func.func @transform_2(%arg0: i32, %arg1: i32) -> (i32, i32, i32) {
    %c0_i32 = arith.constant 0 : i32
    %c0_i32_0 = arith.constant 0 : i32
    %c0_i32_1 = arith.constant 0 : i32
    return %arg0, %c0_i32, %c0_i32_0 : i32, i32, i32
  }
}

</mosaic_0001>

<llo_original>
// kernel: _sq_diff_sum_impl.1
$region0: #{_sq_diff_sum_impl.1}
  #allocation0 [shape = 'u32[]', space=smem, size = 0x4, offset = 0x4, fixed_abs, tag = 'smem constant byte address 0x4 - core index']
  #allocation1 [shape = 'u32[144,128]{1,0:T(1,128)}', space=vmem, size = 0x12000, scoped, tag = 'internal scratch']
  #allocation2 [shape = 'f32[1]{0:T(128)}', space=smem, size = 0x200, scoped, tag = 'scratch operand']
  %s0 = inlined_call_operand.vmem [shape: f32[4,512], index: 0, kind: input, shape index: {}]
  %s1 = inlined_call_operand.vmem [shape: f32[4,512], index: 1, kind: input, shape index: {}]
  %s2 = inlined_call_operand.vmem [shape: f32[1,8,128], index: 2, kind: output, shape index: {}]
  %s3 = sld [smem:[#allocation0]]
  $region26: #{_sq_diff_sum_impl.1} parent=0
    _
  %s5 = ssub.s32 1, %s3
  %s6 = scalar_select 0, %s5, %s3
  // Predicated region
  $region2: #{_sq_diff_sum_impl.1} parent=0 // pred_check
    _
  $region3: #{_sq_diff_sum_impl.1} parent=0 // pred_check_branch
    %8 = sbr.rel (0) target = $region5
  $region4: #{_sq_diff_sum_impl.1} parent=0 // pred_region
    %s9 = sadd.s32 0, 0
    %p10 = scmp.lt.s32.totalorder %s9, 0
    %s11 = scalar_select %p10, %s9, 0
    %p12 = scmp.lt.s32.totalorder %s11, 0
    %s13 = scalar_select %p12, %s11, 0
    %s14 = smul.addr %s13, 4
    %s15 = smul.addr %s14, 4
    %s16 = scalar_lea.vmem %s0, %s15
    %s17 = sadd.s32 0, 0
    %p18 = scmp.lt.s32.totalorder %s17, 0
    %s19 = scalar_select %p18, %s17, 0
  $region5: #{_sq_diff_sum_impl.1} parent=0 // pred_fallthru
    _
  // Predicated region
  $region6: #{_sq_diff_sum_impl.1} parent=0 // pred_check
    _
  $region7: #{_sq_diff_sum_impl.1} parent=0 // pred_check_branch
    %21 = sbr.rel (0) target = $region9
  $region8: #{_sq_diff_sum_impl.1} parent=0 // pred_region
    %s22 = sadd.s32 0, 0
    %p23 = scmp.lt.s32.totalorder %s22, 0
    %s24 = scalar_select %p23, %s22, 0
    %p25 = scmp.lt.s32.totalorder %s24, 0
    %s26 = scalar_select %p25, %s24, 0
    %s27 = smul.addr %s26, 4
    %s28 = smul.addr %s27, 4
    %s29 = scalar_lea.vmem %s1, %s28
    %s30 = sadd.s32 0, 0
    %p31 = scmp.lt.s32.totalorder %s30, 0
    %s32 = scalar_select %p31, %s30, 0
  $region9: #{_sq_diff_sum_impl.1} parent=0 // pred_fallthru
    _
  %s33 = sadd.s32 0, 0
  %p34 = scmp.lt.s32.totalorder %s33, 0
  %s35 = scalar_select %p34, %s33, 0
  %p36 = scmp.lt.s32.totalorder %s35, 0
  %s37 = scalar_select %p36, %s35, 0
  %s38 = smul.addr %s37, 4
  %s39 = smul.addr %s38, 4
  %s40 = scalar_lea.vmem %s0, %s39
  %s41 = sadd.s32 0, 0
  %p42 = scmp.lt.s32.totalorder %s41, 0
  %s43 = scalar_select %p42, %s41, 0
  %p44 = scmp.lt.s32.totalorder %s43, 0
  %s45 = scalar_select %p44, %s43, 0
  %s46 = smul.addr %s45, 4
  %s47 = smul.addr %s46, 4
  %s48 = scalar_lea.vmem %s1, %s47
  %s49 = sadd.s32 0, 0
  %p50 = scmp.lt.s32.totalorder %s49, 0
  %s51 = scalar_select %p50, %s49, 0
  %p52 = scmp.lt.s32.totalorder %s51, 0
  %s53 = scalar_select %p52, %s51, 0
  %s54 = smul.addr %s53, 4
  %s55 = smul.addr %s54, 4
  %s56 = scalar_lea.vmem %s0, %s55
  %s57 = sadd.s32 0, 0
  %p58 = scmp.lt.s32.totalorder %s57, 0
  %s59 = scalar_select %p58, %s57, 0
  %s60 = sadd.s32 0, 0
  %p61 = scmp.lt.s32.totalorder %s60, 0
  %s62 = scalar_select %p61, %s60, 0
  %p63 = scmp.lt.s32.totalorder %s62, 0
  %s64 = scalar_select %p63, %s62, 0
  %s65 = smul.addr %s64, 4
  %s66 = smul.addr %s65, 4
  %s67 = scalar_lea.vmem %s1, %s66
  %s68 = sadd.s32 0, 0
  %p69 = scmp.lt.s32.totalorder %s68, 0
  %s70 = scalar_select %p69, %s68, 0
  %p71 = scmp.eq.s32.totalorder 0, 0
  // Predicated region
  $region10: #{_sq_diff_sum_impl.1} parent=0 // pred_check
    %p72 = pneg %p71
  $region11: #{_sq_diff_sum_impl.1} parent=0 // pred_check_branch
    %74 = sbr.rel (%p72) target = $region13
  $region12: #{_sq_diff_sum_impl.1} parent=0 // pred_region
    %s75 = scalar_lea.smem [#allocation2], 0
    %76 = sst [smem:[%s75]] 0.0
  $region13: #{_sq_diff_sum_impl.1} parent=0 // pred_fallthru
    _
  %v77 = vld [vmem:[%s56] sm:$0xff]
  %v78 = vld [vmem:[%s56 + $0x8] sm:$0xff]
  %v79 = vld [vmem:[%s67] sm:$0xff]
  %v80 = vld [vmem:[%s67 + $0x8] sm:$0xff]
  %v81 = vsub.f32 %v77, %v79
  %v82 = vsub.f32 %v78, %v80
  %v83 = vmul.f32 %v81, %v81
  %v84 = vmul.f32 %v82, %v82
  %s85 = sld [smem:[#allocation2]]
  %v88 = vcombine.high %v83, %v83
  %v89 = vcombine.high %v84, %v84
  %vm92 = vcmask 1043456
  %v93 = vsel %vm92, %v83, 0.0
  %v94 = vsel %vm92, %v88, 0.0
  %v95 = vadd.f32 %v93, %v94
  %v96 = vsel %vm92, %v84, 0.0
  %v97 = vadd.f32 %v95, %v96
  %v98 = vsel %vm92, %v89, 0.0
  %v99 = vadd.f32 %v97, %v98
  %100 = vadd.xlane.f32.xlu0 %v99
  %v101 = vpop.xlane.xlu0 %100
  %v102 = vrot.slane %v101, 4
  %v103 = vadd.f32 %v101, %v102
  %v104 = vrot.slane %v103, 2
  %v105 = vadd.f32 %v103, %v104
  %v106 = vrot.slane %v105, 1
  %v107 = vadd.f32 %v105, %v106
  %s108 = vtos %v107
  %s109 = sadd.f32 %s85, %s108
  %s110 = scalar_lea.smem [#allocation2], 0
  %111 = sst [smem:[%s110]] %s109
  // Predicated region
  $region14: #{_sq_diff_sum_impl.1} parent=0 // pred_check
    %p112 = pneg %p71
  $region15: #{_sq_diff_sum_impl.1} parent=0 // pred_check_branch
    %114 = sbr.rel (%p112) target = $region17
  $region16: #{_sq_diff_sum_impl.1} parent=0 // pred_region
    %s115 = sld [smem:[#allocation2]]
    %v116 = vstv %s115
    %117 = vst [vmem:[%s2] sm:$0xff] %v116
  $region17: #{_sq_diff_sum_impl.1} parent=0 // pred_fallthru
    _
  // Predicated region
  $region18: #{_sq_diff_sum_impl.1} parent=0 // pred_check
    _
  $region19: #{_sq_diff_sum_impl.1} parent=0 // pred_check_branch
    %119 = sbr.rel (0) target = $region21
  $region20: #{_sq_diff_sum_impl.1} parent=0 // pred_region
    _
  $region21: #{_sq_diff_sum_impl.1} parent=0 // pred_fallthru
    _
  // Predicated region
  $region22: #{_sq_diff_sum_impl.1} parent=0 // pred_check
    _
  $region23: #{_sq_diff_sum_impl.1} parent=0 // pred_check_branch
    %121 = sbr.rel (0) target = $region25
  $region24: #{_sq_diff_sum_impl.1} parent=0 // pred_region
    _
  $region25: #{_sq_diff_sum_impl.1} parent=0 // pred_fallthru
    _

</llo_original>
